<compile_context>
chip_gen: v6e
topology: v6e:2x2x1
jax: 0.10.0
libtpu: 0.0.40
codegen_flags: <defaults>
</compile_context>

<pallas_src>
import math

import jax
import jax.numpy as jnp
from jax.experimental import pallas as pl
from jax.experimental.pallas import tpu as pltpu


# ---------------------------------------------------------------------------
# Fused Mixture kernel (one batch tile per grid step)
# ---------------------------------------------------------------------------
def _make_mixture_kernel(L, Vg, Vs):
    def kernel(state_ref, sel_ref, gen_ref, bmap_ref, w_ref, b_ref, out_ref):
        # state_ref: [tb, S]       hidden state (original dtype)
        # sel_ref:   [tb, L]       selector_action logits
        # gen_ref:   [tb, Vg]      generator_action logits
        # bmap_ref:  [tb, L*Vs]    b_map flattened, original (possibly narrow) dtype
        # w_ref:     [1, S]        linear_mixture weight (single output row), VMEM
        # b_ref:     [1, 1]        linear_mixture bias, SMEM scalar
        # out_ref:   [tb, Vg+Vs]   cat([generator, selector], dim=1), f32
        f32 = jnp.float32

        # p_s_g = sigmoid(state @ W^T + b).  W has one output row, so use a
        # broadcast-multiply + lane reduce instead of a degenerate N=1 matmul.
        x = state_ref[...].astype(f32)                              # [tb, S]
        w = w_ref[...].astype(f32)                                  # [1,  S]
        logit = jnp.sum(x * w, axis=-1, keepdims=True) + b_ref[0, 0]
        p = jax.nn.sigmoid(logit)                                   # [tb, 1]

        # softmax(generator_action, dim=1) * p_s_g   (exact division: the
        # EUP/VALU work hides entirely under the b_map DMA, so keep parity)
        g = gen_ref[...].astype(f32)
        g = g - jnp.max(g, axis=-1, keepdims=True)
        ge = jnp.exp(g)
        gen_out = (ge / jnp.sum(ge, axis=-1, keepdims=True)) * p    # [tb, Vg]

        # softmax(selector_action, dim=1)
        s = sel_ref[...].astype(f32)
        s = s - jnp.max(s, axis=-1, keepdims=True)
        se = jnp.exp(s)
        s_soft = se / jnp.sum(se, axis=-1, keepdims=True)           # [tb, L]

        # bmm(sel.unsqueeze(1), b_map).squeeze(1): per-batch M=1 vec-mat.
        # Accumulate over L using lane-aligned [tb, Vs] slices of the
        # flattened b_map block -> no [tb, L, Vs] f32 temporary, no
        # cross-sublane reduce; just VALU FMAs hidden under the DMA.
        # (L is small/static in this module, so the loop is fully unrolled.)
        sel_proj = s_soft[:, 0:1] * bmap_ref[:, 0:Vs].astype(f32)
        for l in range(1, L):
            sel_proj = sel_proj + (
                s_soft[:, l:l + 1]
                * bmap_ref[:, l * Vs:(l + 1) * Vs].astype(f32))
        sel_out = sel_proj * (1.0 - p)                              # [tb, Vs]

        # fused concat: two slice stores; with Vg, Vs multiples of 128 both
        # are unmasked lane-dense vst (no concatenated vreg temporary).
        out_ref[:, 0:Vg] = gen_out
        out_ref[:, Vg:Vg + Vs] = sel_out

    return kernel


# ---------------------------------------------------------------------------
# Batch-tile selection
# ---------------------------------------------------------------------------
def _sublane_align(dtype):
    # f32 -> 8 sublanes, bf16 -> 16, int8/bool -> 32 (sub-32-bit sublane packing)
    return max(8, 32 // jnp.dtype(dtype).itemsize)


def _pick_batch_tile(B, align, bmap_row_bytes, pipeline_row_bytes,
                     target_bmap_block_bytes=2 << 20,
                     vmem_budget_bytes=12 << 20):
    """Largest divisor-of-B batch tile such that:
      * the tile is sublane-aligned for every input dtype (or equals B),
      * the b_map block is ~1-2 MiB (long contiguous DMAs, low per-step overhead),
      * the double-buffered pipeline fits a conservative VMEM budget that is
        safe under v5e's 16 MiB scoped default and v7x's 64 MiB physical VMEM,
      * and the grid has >= 2 steps when possible so ("parallel",) semantics
        can shard the batch across v7x's two TensorCores."""
    cap = min(max(1, target_bmap_block_bytes // max(1, bmap_row_bytes)),
              max(1, vmem_budget_bytes // max(1, pipeline_row_bytes)))
    cands = [t for t in range(1, B + 1)
             if B % t == 0 and (t % align == 0 or t == B)]
    ok = [t for t in cands if t <= cap] or [min(cands)]
    multi = [t for t in ok if B // t >= 2]
    return max(multi or ok)


# ---------------------------------------------------------------------------
# Wrapper
# ---------------------------------------------------------------------------
def mixture_forward(params, state, selector_action, generator_action, b_map):
    # state[0].squeeze(1): tiny [B, S] slice (negligible next to b_map traffic).
    state_h = state[0][:, 0, :]                       # [B, S], original dtype
    B, S = state_h.shape
    L = selector_action.shape[1]
    Vg = generator_action.shape[1]
    Vs = b_map.shape[2]

    # Free contiguous reshape; NO dtype cast -- b_map streams from HBM in its
    # original (possibly narrow) dtype and is cast per-block inside the kernel.
    bmap2d = b_map.reshape(B, L * Vs)

    w = params["w"]                                   # [1, S]
    b = params["b"].reshape(1, 1).astype(jnp.float32)  # scalar bias -> SMEM

    isz = lambda a: jnp.dtype(a.dtype).itemsize
    bmap_row_bytes = L * Vs * isz(bmap2d)
    pipeline_row_bytes = (
        2 * (S * isz(state_h) + L * isz(selector_action)
             + Vg * isz(generator_action) + bmap_row_bytes)
        + 2 * (Vg + Vs) * 4)
    align = max(_sublane_align(a.dtype)
                for a in (state_h, selector_action, generator_action, bmap2d))

    tb = _pick_batch_tile(B, align, bmap_row_bytes, pipeline_row_bytes)
    grid = (B // tb,)

    kernel = _make_mixture_kernel(L, Vg, Vs)
    return pl.pallas_call(
        kernel,
        out_shape=jax.ShapeDtypeStruct((B, Vg + Vs), jnp.float32),
        grid=grid,
        in_specs=[
            pl.BlockSpec((tb, S), lambda i: (i, 0)),
            pl.BlockSpec((tb, L), lambda i: (i, 0)),
            pl.BlockSpec((tb, Vg), lambda i: (i, 0)),
            pl.BlockSpec((tb, L * Vs), lambda i: (i, 0)),
            pl.BlockSpec((1, S), lambda i: (0, 0)),
            pl.BlockSpec(memory_space=pltpu.MemorySpace.SMEM),   # scalar bias
        ],
        out_specs=pl.BlockSpec((tb, Vg + Vs), lambda i: (i, 0)),
        compiler_params=pltpu.CompilerParams(
            dimension_semantics=("parallel",)),
    )(state_h, selector_action, generator_action, bmap2d, w, b)


# ---------------------------------------------------------------------------
# Pure-JAX reference (mirrors the PyTorch forward exactly)
# ---------------------------------------------------------------------------
def mixture_reference(params, state, selector_action, generator_action, b_map):
    state_h = state[0][:, 0, :].astype(jnp.float32)
    p = jax.nn.sigmoid(state_h @ params["w"].astype(jnp.float32).T
                       + params["b"].astype(jnp.float32).reshape(1, 1))
    gen = jax.nn.softmax(generator_action.astype(jnp.float32), axis=1) * p
    sel_soft = jax.nn.softmax(selector_action.astype(jnp.float32), axis=1)
    sel = jnp.einsum("bl,blv->bv", sel_soft, b_map.astype(jnp.float32)) * (1.0 - p)
    return jnp.concatenate([gen, sel], axis=1)


# ---------------------------------------------------------------------------
# Demo / self-test
# ---------------------------------------------------------------------------
if __name__ == "__main__":
    # Small but lane/sublane-dense shapes: B=16 so the auto-picked tile (tb=8)
    # gives grid=(2,) and both v7x TensorCores get work; Vg/Vs multiples of 128.
    B, S, L, Vg, Vs = 16, 128, 16, 128, 128

    key = jax.random.PRNGKey(0)
    k1, k2, k3, k4, k5, k6, k7 = jax.random.split(key, 7)

    bound = 1.0 / math.sqrt(S)   # PyTorch nn.Linear default init range
    params = dict(
        w=jax.random.uniform(k1, (1, S), jnp.float32, -bound, bound),
        b=jax.random.uniform(k2, (1, 1), jnp.float32, -bound, bound),
    )

    # `state` modeled as an (h, c) tuple; the forward uses state[0].squeeze(1)
    # just like the PyTorch module.
    h = jax.random.normal(k3, (B, 1, S), jnp.float32)
    c = jax.random.normal(k4, (B, 1, S), jnp.float32)
    state = (h, c)
    selector_action = jax.random.normal(k5, (B, L), jnp.float32)
    generator_action = jax.random.normal(k6, (B, Vg), jnp.float32)
    b_map = jax.random.uniform(k7, (B, L, Vs), jnp.float32)   # .float() in forward

    out = mixture_forward(params, state, selector_action, generator_action, b_map)
    out = jax.block_until_ready(out)

    ref = mixture_reference(params, state, selector_action, generator_action, b_map)

    assert out.shape == (B, Vg + Vs)
    assert bool(jnp.all(jnp.isfinite(out)))
    assert bool(jnp.allclose(out, ref, atol=1e-5, rtol=1e-5))
    print("KERNEL_OK")
</pallas_src>

<mosaic_0001>
module attributes {stable_mosaic.version = 11 : i64} {
  func.func @kernel(%arg0: i32, %arg1: memref<8x128xf32, #tpu.memory_space<vmem>>, %arg2: memref<8x16xf32, #tpu.memory_space<vmem>>, %arg3: memref<8x128xf32, #tpu.memory_space<vmem>>, %arg4: memref<8x2048xf32, #tpu.memory_space<vmem>>, %arg5: memref<1x128xf32, #tpu.memory_space<vmem>>, %arg6: memref<1x1xf32, #tpu.memory_space<smem>>, %arg7: memref<8x256xf32, #tpu.memory_space<vmem>>) attributes {dimension_semantics = [#tpu.dimension_semantics<parallel>], iteration_bounds = array<i64: 2>, scalar_prefetch = 0 : i64, scratch_operands = 0 : i64, tpu.core_type = #tpu.core_type<tc>, window_params = [{transform_indices = @transform_0, window_bounds = array<i64: 8, 128>}, {transform_indices = @transform_1, window_bounds = array<i64: 8, 16>}, {transform_indices = @transform_2, window_bounds = array<i64: 8, 128>}, {transform_indices = @transform_3, window_bounds = array<i64: 8, 2048>}, {pipeline_mode = #tpu.pipeline_mode<synchronous>, transform_indices = @transform_4, window_bounds = array<i64: 1, 128>}, {transform_indices = @transform_5, window_bounds = array<i64: 1, 1>}, {transform_indices = @transform_6, window_bounds = array<i64: 8, 256>}]} {
    %c0 = arith.constant 0 : index
    %c0_0 = arith.constant 0 : index
    %0 = vector.load %arg1[%c0, %c0_0] : memref<8x128xf32, #tpu.memory_space<vmem>>, vector<8x128xf32>
    %c0_1 = arith.constant 0 : index
    %c0_2 = arith.constant 0 : index
    %1 = vector.load %arg5[%c0_1, %c0_2] : memref<1x128xf32, #tpu.memory_space<vmem>>, vector<1x128xf32>
    %2 = vector.broadcast %1 : vector<1x128xf32> to vector<8x128xf32>
    %3 = arith.mulf %0, %2 : vector<8x128xf32>
    %cst = arith.constant dense<0.000000e+00> : vector<8xf32>
    %4 = vector.multi_reduction <add>, %3, %cst [1] : vector<8x128xf32> to vector<8xf32>
    %5 = vector.shape_cast %4 : vector<8xf32> to vector<8x1xf32>
    %c0_3 = arith.constant 0 : index
    %c0_4 = arith.constant 0 : index
    %6 = memref.load %arg6[%c0_3, %c0_4] : memref<1x1xf32, #tpu.memory_space<smem>>
    %7 = vector.broadcast %6 : f32 to vector<8x1xf32>
    %8 = arith.addf %5, %7 : vector<8x1xf32>
    %9 = arith.negf %8 : vector<8x1xf32>
    %10 = math.exp %9 : vector<8x1xf32>
    %cst_5 = arith.constant 1.000000e+00 : f32
    %11 = vector.broadcast %cst_5 : f32 to vector<8x1xf32>
    %12 = arith.addf %11, %10 : vector<8x1xf32>
    %13 = arith.divf %11, %12 : vector<8x1xf32>
    %c0_6 = arith.constant 0 : index
    %c0_7 = arith.constant 0 : index
    %14 = vector.load %arg3[%c0_6, %c0_7] : memref<8x128xf32, #tpu.memory_space<vmem>>, vector<8x128xf32>
    %cst_8 = arith.constant dense<0xFF800000> : vector<8xf32>
    %15 = vector.multi_reduction <maximumf>, %14, %cst_8 [1] : vector<8x128xf32> to vector<8xf32>
    %16 = vector.shape_cast %15 : vector<8xf32> to vector<8x1xf32>
    %17 = vector.broadcast %16 : vector<8x1xf32> to vector<8x128xf32>
    %18 = arith.subf %14, %17 : vector<8x128xf32>
    %19 = math.exp %18 : vector<8x128xf32>
    %cst_9 = arith.constant dense<0.000000e+00> : vector<8xf32>
    %20 = vector.multi_reduction <add>, %19, %cst_9 [1] : vector<8x128xf32> to vector<8xf32>
    %21 = vector.shape_cast %20 : vector<8xf32> to vector<8x1xf32>
    %22 = vector.broadcast %21 : vector<8x1xf32> to vector<8x128xf32>
    %23 = arith.divf %19, %22 : vector<8x128xf32>
    %24 = vector.broadcast %13 : vector<8x1xf32> to vector<8x128xf32>
    %25 = arith.mulf %23, %24 : vector<8x128xf32>
    %c0_10 = arith.constant 0 : index
    %c0_11 = arith.constant 0 : index
    %26 = vector.load %arg2[%c0_10, %c0_11] : memref<8x16xf32, #tpu.memory_space<vmem>>, vector<8x16xf32>
    %cst_12 = arith.constant dense<0xFF800000> : vector<8xf32>
    %27 = vector.multi_reduction <maximumf>, %26, %cst_12 [1] : vector<8x16xf32> to vector<8xf32>
    %28 = vector.shape_cast %27 : vector<8xf32> to vector<8x1xf32>
    %29 = vector.broadcast %28 : vector<8x1xf32> to vector<8x16xf32>
    %30 = arith.subf %26, %29 : vector<8x16xf32>
    %31 = math.exp %30 : vector<8x16xf32>
    %cst_13 = arith.constant dense<0.000000e+00> : vector<8xf32>
    %32 = vector.multi_reduction <add>, %31, %cst_13 [1] : vector<8x16xf32> to vector<8xf32>
    %33 = vector.shape_cast %32 : vector<8xf32> to vector<8x1xf32>
    %34 = vector.broadcast %33 : vector<8x1xf32> to vector<8x16xf32>
    %35 = arith.divf %31, %34 : vector<8x16xf32>
    %36 = vector.extract_strided_slice %35 {offsets = [0, 0], sizes = [8, 1], strides = [1, 1]} : vector<8x16xf32> to vector<8x1xf32>
    %c0_14 = arith.constant 0 : index
    %c0_15 = arith.constant 0 : index
    %37 = vector.load %arg4[%c0_14, %c0_15] : memref<8x2048xf32, #tpu.memory_space<vmem>>, vector<8x128xf32>
    %38 = vector.broadcast %36 : vector<8x1xf32> to vector<8x128xf32>
    %39 = arith.mulf %38, %37 : vector<8x128xf32>
    %40 = vector.extract_strided_slice %35 {offsets = [0, 1], sizes = [8, 1], strides = [1, 1]} : vector<8x16xf32> to vector<8x1xf32>
    %c0_16 = arith.constant 0 : index
    %c128 = arith.constant 128 : index
    %41 = vector.load %arg4[%c0_16, %c128] : memref<8x2048xf32, #tpu.memory_space<vmem>>, vector<8x128xf32>
    %42 = vector.broadcast %40 : vector<8x1xf32> to vector<8x128xf32>
    %43 = arith.mulf %42, %41 : vector<8x128xf32>
    %44 = arith.addf %39, %43 : vector<8x128xf32>
    %45 = vector.extract_strided_slice %35 {offsets = [0, 2], sizes = [8, 1], strides = [1, 1]} : vector<8x16xf32> to vector<8x1xf32>
    %c0_17 = arith.constant 0 : index
    %c256 = arith.constant 256 : index
    %46 = vector.load %arg4[%c0_17, %c256] : memref<8x2048xf32, #tpu.memory_space<vmem>>, vector<8x128xf32>
    %47 = vector.broadcast %45 : vector<8x1xf32> to vector<8x128xf32>
    %48 = arith.mulf %47, %46 : vector<8x128xf32>
    %49 = arith.addf %44, %48 : vector<8x128xf32>
    %50 = vector.extract_strided_slice %35 {offsets = [0, 3], sizes = [8, 1], strides = [1, 1]} : vector<8x16xf32> to vector<8x1xf32>
    %c0_18 = arith.constant 0 : index
    %c384 = arith.constant 384 : index
    %51 = vector.load %arg4[%c0_18, %c384] : memref<8x2048xf32, #tpu.memory_space<vmem>>, vector<8x128xf32>
    %52 = vector.broadcast %50 : vector<8x1xf32> to vector<8x128xf32>
    %53 = arith.mulf %52, %51 : vector<8x128xf32>
    %54 = arith.addf %49, %53 : vector<8x128xf32>
    %55 = vector.extract_strided_slice %35 {offsets = [0, 4], sizes = [8, 1], strides = [1, 1]} : vector<8x16xf32> to vector<8x1xf32>
    %c0_19 = arith.constant 0 : index
    %c512 = arith.constant 512 : index
    %56 = vector.load %arg4[%c0_19, %c512] : memref<8x2048xf32, #tpu.memory_space<vmem>>, vector<8x128xf32>
    %57 = vector.broadcast %55 : vector<8x1xf32> to vector<8x128xf32>
    %58 = arith.mulf %57, %56 : vector<8x128xf32>
    %59 = arith.addf %54, %58 : vector<8x128xf32>
    %60 = vector.extract_strided_slice %35 {offsets = [0, 5], sizes = [8, 1], strides = [1, 1]} : vector<8x16xf32> to vector<8x1xf32>
    %c0_20 = arith.constant 0 : index
    %c640 = arith.constant 640 : index
    %61 = vector.load %arg4[%c0_20, %c640] : memref<8x2048xf32, #tpu.memory_space<vmem>>, vector<8x128xf32>
    %62 = vector.broadcast %60 : vector<8x1xf32> to vector<8x128xf32>
    %63 = arith.mulf %62, %61 : vector<8x128xf32>
    %64 = arith.addf %59, %63 : vector<8x128xf32>
    %65 = vector.extract_strided_slice %35 {offsets = [0, 6], sizes = [8, 1], strides = [1, 1]} : vector<8x16xf32> to vector<8x1xf32>
    %c0_21 = arith.constant 0 : index
    %c768 = arith.constant 768 : index
    %66 = vector.load %arg4[%c0_21, %c768] : memref<8x2048xf32, #tpu.memory_space<vmem>>, vector<8x128xf32>
    %67 = vector.broadcast %65 : vector<8x1xf32> to vector<8x128xf32>
    %68 = arith.mulf %67, %66 : vector<8x128xf32>
    %69 = arith.addf %64, %68 : vector<8x128xf32>
    %70 = vector.extract_strided_slice %35 {offsets = [0, 7], sizes = [8, 1], strides = [1, 1]} : vector<8x16xf32> to vector<8x1xf32>
    %c0_22 = arith.constant 0 : index
    %c896 = arith.constant 896 : index
    %71 = vector.load %arg4[%c0_22, %c896] : memref<8x2048xf32, #tpu.memory_space<vmem>>, vector<8x128xf32>
    %72 = vector.broadcast %70 : vector<8x1xf32> to vector<8x128xf32>
    %73 = arith.mulf %72, %71 : vector<8x128xf32>
    %74 = arith.addf %69, %73 : vector<8x128xf32>
    %75 = vector.extract_strided_slice %35 {offsets = [0, 8], sizes = [8, 1], strides = [1, 1]} : vector<8x16xf32> to vector<8x1xf32>
    %c0_23 = arith.constant 0 : index
    %c1024 = arith.constant 1024 : index
    %76 = vector.load %arg4[%c0_23, %c1024] : memref<8x2048xf32, #tpu.memory_space<vmem>>, vector<8x128xf32>
    %77 = vector.broadcast %75 : vector<8x1xf32> to vector<8x128xf32>
    %78 = arith.mulf %77, %76 : vector<8x128xf32>
    %79 = arith.addf %74, %78 : vector<8x128xf32>
    %80 = vector.extract_strided_slice %35 {offsets = [0, 9], sizes = [8, 1], strides = [1, 1]} : vector<8x16xf32> to vector<8x1xf32>
    %c0_24 = arith.constant 0 : index
    %c1152 = arith.constant 1152 : index
    %81 = vector.load %arg4[%c0_24, %c1152] : memref<8x2048xf32, #tpu.memory_space<vmem>>, vector<8x128xf32>
    %82 = vector.broadcast %80 : vector<8x1xf32> to vector<8x128xf32>
    %83 = arith.mulf %82, %81 : vector<8x128xf32>
    %84 = arith.addf %79, %83 : vector<8x128xf32>
    %85 = vector.extract_strided_slice %35 {offsets = [0, 10], sizes = [8, 1], strides = [1, 1]} : vector<8x16xf32> to vector<8x1xf32>
    %c0_25 = arith.constant 0 : index
    %c1280 = arith.constant 1280 : index
    %86 = vector.load %arg4[%c0_25, %c1280] : memref<8x2048xf32, #tpu.memory_space<vmem>>, vector<8x128xf32>
    %87 = vector.broadcast %85 : vector<8x1xf32> to vector<8x128xf32>
    %88 = arith.mulf %87, %86 : vector<8x128xf32>
    %89 = arith.addf %84, %88 : vector<8x128xf32>
    %90 = vector.extract_strided_slice %35 {offsets = [0, 11], sizes = [8, 1], strides = [1, 1]} : vector<8x16xf32> to vector<8x1xf32>
    %c0_26 = arith.constant 0 : index
    %c1408 = arith.constant 1408 : index
    %91 = vector.load %arg4[%c0_26, %c1408] : memref<8x2048xf32, #tpu.memory_space<vmem>>, vector<8x128xf32>
    %92 = vector.broadcast %90 : vector<8x1xf32> to vector<8x128xf32>
    %93 = arith.mulf %92, %91 : vector<8x128xf32>
    %94 = arith.addf %89, %93 : vector<8x128xf32>
    %95 = vector.extract_strided_slice %35 {offsets = [0, 12], sizes = [8, 1], strides = [1, 1]} : vector<8x16xf32> to vector<8x1xf32>
    %c0_27 = arith.constant 0 : index
    %c1536 = arith.constant 1536 : index
    %96 = vector.load %arg4[%c0_27, %c1536] : memref<8x2048xf32, #tpu.memory_space<vmem>>, vector<8x128xf32>
    %97 = vector.broadcast %95 : vector<8x1xf32> to vector<8x128xf32>
    %98 = arith.mulf %97, %96 : vector<8x128xf32>
    %99 = arith.addf %94, %98 : vector<8x128xf32>
    %100 = vector.extract_strided_slice %35 {offsets = [0, 13], sizes = [8, 1], strides = [1, 1]} : vector<8x16xf32> to vector<8x1xf32>
    %c0_28 = arith.constant 0 : index
    %c1664 = arith.constant 1664 : index
    %101 = vector.load %arg4[%c0_28, %c1664] : memref<8x2048xf32, #tpu.memory_space<vmem>>, vector<8x128xf32>
    %102 = vector.broadcast %100 : vector<8x1xf32> to vector<8x128xf32>
    %103 = arith.mulf %102, %101 : vector<8x128xf32>
    %104 = arith.addf %99, %103 : vector<8x128xf32>
    %105 = vector.extract_strided_slice %35 {offsets = [0, 14], sizes = [8, 1], strides = [1, 1]} : vector<8x16xf32> to vector<8x1xf32>
    %c0_29 = arith.constant 0 : index
    %c1792 = arith.constant 1792 : index
    %106 = vector.load %arg4[%c0_29, %c1792] : memref<8x2048xf32, #tpu.memory_space<vmem>>, vector<8x128xf32>
    %107 = vector.broadcast %105 : vector<8x1xf32> to vector<8x128xf32>
    %108 = arith.mulf %107, %106 : vector<8x128xf32>
    %109 = arith.addf %104, %108 : vector<8x128xf32>
    %110 = vector.extract_strided_slice %35 {offsets = [0, 15], sizes = [8, 1], strides = [1, 1]} : vector<8x16xf32> to vector<8x1xf32>
    %c0_30 = arith.constant 0 : index
    %c1920 = arith.constant 1920 : index
    %111 = vector.load %arg4[%c0_30, %c1920] : memref<8x2048xf32, #tpu.memory_space<vmem>>, vector<8x128xf32>
    %112 = vector.broadcast %110 : vector<8x1xf32> to vector<8x128xf32>
    %113 = arith.mulf %112, %111 : vector<8x128xf32>
    %114 = arith.addf %109, %113 : vector<8x128xf32>
    %cst_31 = arith.constant 1.000000e+00 : f32
    %115 = vector.broadcast %cst_31 : f32 to vector<8x1xf32>
    %116 = arith.subf %115, %13 : vector<8x1xf32>
    %117 = vector.broadcast %116 : vector<8x1xf32> to vector<8x128xf32>
    %118 = arith.mulf %114, %117 : vector<8x128xf32>
    %c0_32 = arith.constant 0 : index
    %c0_33 = arith.constant 0 : index
    %119 = vector.load %arg7[%c0_32, %c0_33] : memref<8x256xf32, #tpu.memory_space<vmem>>, vector<8x128xf32>
    tpu.vector_store %arg7[%c0_32, %c0_33], %25 {strides = array<i32>} : memref<8x256xf32, #tpu.memory_space<vmem>>, vector<8x128xf32>,
    %c0_34 = arith.constant 0 : index
    %c128_35 = arith.constant 128 : index
    %120 = vector.load %arg7[%c0_34, %c128_35] : memref<8x256xf32, #tpu.memory_space<vmem>>, vector<8x128xf32>
    tpu.vector_store %arg7[%c0_34, %c128_35], %118 {strides = array<i32>} : memref<8x256xf32, #tpu.memory_space<vmem>>, vector<8x128xf32>,
    return
  }
  func.func @transform_0(%arg0: i32) -> (i32, i32) {
    %c0_i32 = arith.constant 0 : i32
    %c0_i32_0 = arith.constant 0 : i32
    return %arg0, %c0_i32 : i32, i32
  }
  func.func @transform_1(%arg0: i32) -> (i32, i32) {
    %c0_i32 = arith.constant 0 : i32
    %c0_i32_0 = arith.constant 0 : i32
    return %arg0, %c0_i32 : i32, i32
  }
  func.func @transform_2(%arg0: i32) -> (i32, i32) {
    %c0_i32 = arith.constant 0 : i32
    %c0_i32_0 = arith.constant 0 : i32
    return %arg0, %c0_i32 : i32, i32
  }
  func.func @transform_3(%arg0: i32) -> (i32, i32) {
    %c0_i32 = arith.constant 0 : i32
    %c0_i32_0 = arith.constant 0 : i32
    return %arg0, %c0_i32 : i32, i32
  }
  func.func @transform_4(%arg0: i32) -> (i32, i32) {
    %c0_i32 = arith.constant 0 : i32
    %c0_i32_0 = arith.constant 0 : i32
    %c0_i32_1 = arith.constant 0 : i32
    return %c0_i32, %c0_i32_0 : i32, i32
  }
  func.func @transform_5(%arg0: i32) -> (i32, i32) {
    %c0_i32 = arith.constant 0 : i32
    %c0_i32_0 = arith.constant 0 : i32
    %c0_i32_1 = arith.constant 0 : i32
    return %c0_i32, %c0_i32_0 : i32, i32
  }
  func.func @transform_6(%arg0: i32) -> (i32, i32) {
    %c0_i32 = arith.constant 0 : i32
    %c0_i32_0 = arith.constant 0 : i32
    return %arg0, %c0_i32 : i32, i32
  }
}

</mosaic_0001>

<llo_original>
// kernel: tpu_custom_call.1
$region0: #{tpu_custom_call.1}
  #allocation0 [shape = 'u32[]', space=smem, size = 0x4, offset = 0x4, fixed_abs, tag = 'smem constant byte address 0x4 - core index']
  #allocation1 [shape = 'u32[144,128]{1,0:T(1,128)}', space=vmem, size = 0x12000, scoped, tag = 'internal scratch']
  #allocation2 [shape = 'f32[1,1]{1,0:T(1,128)S(6)}', space=smem, size = 0x200, scoped, tag = 'scoped memory for tpu_custom_call.1']
  %s0 = inlined_call_operand.hbm [shape: f32[16,128], index: 0, kind: input, shape index: {}]
  %s1 = inlined_call_operand.hbm [shape: f32[16,16], index: 1, kind: input, shape index: {}]
  %s2 = inlined_call_operand.hbm [shape: f32[16,128], index: 2, kind: input, shape index: {}]
  %s3 = inlined_call_operand.hbm [shape: f32[16,2048], index: 3, kind: input, shape index: {}]
  %s4 = inlined_call_operand.vmem [shape: f32[1,128], index: 4, kind: input, shape index: {}]
  %s5 = inlined_call_operand.<no memory space> [shape: f32[1,1], index: 5, kind: input, shape index: {}]
  %s6 = inlined_call_operand.hbm [shape: f32[16,256], index: 6, kind: output, shape index: {}]
  %s7 = sld [smem:[#allocation0]]
  $region73: #{tpu_custom_call.1} parent=0
    _
  %s9 = ssub.s32 1, %s7
  %s10 = scalar_select 0, %s9, %s7
  %11 = sst [smem:[#allocation2]] %s5
  $region1: #{tpu_custom_call.1} parent=0
    #allocation3 [shape = 'u8[8192]{0}', space=vmem, size = 0x2000, scoped, tag = 'input window, operand 0']
    #allocation4 [shape = 's32[2]{0}', space=sflag, size = 0x8, scoped, tag = 'scoped memory for tpu_custom_call.1']
    #allocation5 [shape = 's32[2]{0}', space=sflag, size = 0x8, scoped, tag = 'scoped memory for tpu_custom_call.1']
    #allocation6 [shape = 'u8[8192]{0}', space=vmem, size = 0x2000, scoped, tag = 'input window, operand 1']
    #allocation7 [shape = 's32[2]{0}', space=sflag, size = 0x8, scoped, tag = 'scoped memory for tpu_custom_call.1']
    #allocation8 [shape = 'u8[8192]{0}', space=vmem, size = 0x2000, scoped, tag = 'input window, operand 2']
    #allocation9 [shape = 'u8[131072]{0}', space=vmem, size = 0x20000, scoped, tag = 'input window, operand 3']
    #allocation10 [shape = 's32[2]{0}', space=sflag, size = 0x8, scoped, tag = 'scoped memory for tpu_custom_call.1']
    #allocation11 [shape = 'u8[16384]{0}', space=vmem, size = 0x4000, scoped, tag = 'output window, operand 0']
    %12 = vsyncpa [#allocation4], 0
    %s13 = scalar_lea.sflag [#allocation4], 1
    %14 = vsyncpa %s13, 0
    %15 = vsyncpa [#allocation7], 0
    %s16 = scalar_lea.sflag [#allocation7], 1
    %17 = vsyncpa %s16, 0
    %18 = vsyncpa [#allocation10], 0
    %s19 = scalar_lea.sflag [#allocation10], 1
    %20 = vsyncpa %s19, 0
    %21 = vsyncpa [#allocation5], 0
    %s22 = scalar_lea.sflag [#allocation5], 1
    %23 = vsyncpa %s22, 0
    loop: start=0, step=1, limit=4
    $region2: #{tpu_custom_call.1} parent=1 // loop_pre_header
      _
    $region3: #{tpu_custom_call.1} parent=1 // loop_header
      %s25 = sphi 0, %s29
      %p26 = scmp.ge.s32.totalorder %s25, 4
      %s35 = sphi 0, %s37
      %s38 = sphi 0, %s35
      %s39 = sphi 0, %s38
      %s55 = sphi 0, %s39
      %s61 = sphi 0, %s63
      %s64 = sphi 0, %s61
      %s65 = sphi 0, %s64
      %s81 = sphi 0, %s65
      %s87 = sphi 0, %s89
      %s90 = sphi 0, %s87
      %s91 = sphi 0, %s90
      %s107 = sphi 0, %s91
      %s113 = sphi 0, %s115
      %s116 = sphi 0, %s113
      %s117 = sphi 0, %s116
      %s133 = sphi 0, %s117
      %s137 = sphi 0, %s137
      %s139 = sphi 0, %s137
      %s140 = sphi 0, %s139
      %s154 = sphi 0, %s140
      %s158 = sphi 0, %s158
      %s160 = sphi 0, %s158
      %s161 = sphi 0, %s160
      %s175 = sphi 0, %s161
      %s181 = sphi 0, %s183
      %s184 = sphi 0, %s181
      %s185 = sphi 0, %s184
      %s201 = sphi 0, %s185
    $region4: #{tpu_custom_call.1} parent=1 // loop_header_branch
      %28 = sbr.rel (%p26) target = $region8
    $region5: #{tpu_custom_call.1} parent=1 // loop_body
      %s30 = ssub.s32 %s25, 1
      %s31 = ssub.s32 %s25, 2
      %s32 = sadd.s32 %s25, 1
      %s33 = ssub.s32 %s25, %s32
      %p34 = scmp.eq.s32.totalorder %s33, 0
      %s36 = sadd.s32 %s35, 1
      %s37 = scalar_select %p34, %s35, %s36
      %p40 = pneg %p34
      %p41 = scmp.eq.s32.totalorder %s25, 1
      %p42 = por %p40, %p41
      %p43 = scmp.ne.s32.totalorder %s35, %s38
      %p44 = scmp.eq.s32.totalorder %s25, 0
      %p45 = por %p43, %p44
      %p46 = scmp.ne.s32.totalorder %s35, %s38
      %p47 = scmp.eq.s32.totalorder %s30, 1
      %p48 = por %p46, %p47
      %p49 = scmp.ne.s32.totalorder %s38, %s39
      %p50 = scmp.eq.s32.totalorder %s30, 0
      %p51 = por %p49, %p50
      %p52 = scmp.ne.s32.totalorder %s38, %s39
      %p53 = scmp.eq.s32.totalorder %s31, 1
      %p54 = por %p52, %p53
      %p56 = scmp.ne.s32.totalorder %s39, %s55
      %p57 = scmp.eq.s32.totalorder %s31, 0
      %p58 = por %p56, %p57
      %s59 = ssub.s32 %s25, %s32
      %p60 = scmp.eq.s32.totalorder %s59, 0
      %s62 = sadd.s32 %s61, 1
      %s63 = scalar_select %p60, %s61, %s62
      %p66 = pneg %p60
      %p67 = scmp.eq.s32.totalorder %s25, 1
      %p68 = por %p66, %p67
      %p69 = scmp.ne.s32.totalorder %s61, %s64
      %p70 = scmp.eq.s32.totalorder %s25, 0
      %p71 = por %p69, %p70
      %p72 = scmp.ne.s32.totalorder %s61, %s64
      %p73 = scmp.eq.s32.totalorder %s30, 1
      %p74 = por %p72, %p73
      %p75 = scmp.ne.s32.totalorder %s64, %s65
      %p76 = scmp.eq.s32.totalorder %s30, 0
      %p77 = por %p75, %p76
      %p78 = scmp.ne.s32.totalorder %s64, %s65
      %p79 = scmp.eq.s32.totalorder %s31, 1
      %p80 = por %p78, %p79
      %p82 = scmp.ne.s32.totalorder %s65, %s81
      %p83 = scmp.eq.s32.totalorder %s31, 0
      %p84 = por %p82, %p83
      %s85 = ssub.s32 %s25, %s32
      %p86 = scmp.eq.s32.totalorder %s85, 0
      %s88 = sadd.s32 %s87, 1
      %s89 = scalar_select %p86, %s87, %s88
      %p92 = pneg %p86
      %p93 = scmp.eq.s32.totalorder %s25, 1
      %p94 = por %p92, %p93
      %p95 = scmp.ne.s32.totalorder %s87, %s90
      %p96 = scmp.eq.s32.totalorder %s25, 0
      %p97 = por %p95, %p96
      %p98 = scmp.ne.s32.totalorder %s87, %s90
      %p99 = scmp.eq.s32.totalorder %s30, 1
      %p100 = por %p98, %p99
      %p101 = scmp.ne.s32.totalorder %s90, %s91
      %p102 = scmp.eq.s32.totalorder %s30, 0
      %p103 = por %p101, %p102
      %p104 = scmp.ne.s32.totalorder %s90, %s91
      %p105 = scmp.eq.s32.totalorder %s31, 1
      %p106 = por %p104, %p105
      %p108 = scmp.ne.s32.totalorder %s91, %s107
      %p109 = scmp.eq.s32.totalorder %s31, 0
      %p110 = por %p108, %p109
      %s111 = ssub.s32 %s25, %s32
      %p112 = scmp.eq.s32.totalorder %s111, 0
      %s114 = sadd.s32 %s113, 1
      %s115 = scalar_select %p112, %s113, %s114
      %p118 = pneg %p112
      %p119 = scmp.eq.s32.totalorder %s25, 1
      %p120 = por %p118, %p119
      %p121 = scmp.ne.s32.totalorder %s113, %s116
      %p122 = scmp.eq.s32.totalorder %s25, 0
      %p123 = por %p121, %p122
      %p124 = scmp.ne.s32.totalorder %s113, %s116
      %p125 = scmp.eq.s32.totalorder %s30, 1
      %p126 = por %p124, %p125
      %p127 = scmp.ne.s32.totalorder %s116, %s117
      %p128 = scmp.eq.s32.totalorder %s30, 0
      %p129 = por %p127, %p128
      %p130 = scmp.ne.s32.totalorder %s116, %s117
      %p131 = scmp.eq.s32.totalorder %s31, 1
      %p132 = por %p130, %p131
      %p134 = scmp.ne.s32.totalorder %s117, %s133
      %p135 = scmp.eq.s32.totalorder %s31, 0
      %p136 = por %p134, %p135
      %s138 = sadd.s32 %s137, 1
      %p141 = scmp.eq.s32.totalorder %s25, 1
      %p142 = scmp.ne.s32.totalorder %s137, %s139
      %p143 = scmp.eq.s32.totalorder %s25, 0
      %p144 = por %p142, %p143
      %p145 = scmp.ne.s32.totalorder %s137, %s139
      %p146 = scmp.eq.s32.totalorder %s30, 1
      %p147 = por %p145, %p146
      %p148 = scmp.ne.s32.totalorder %s139, %s140
      %p149 = scmp.eq.s32.totalorder %s30, 0
      %p150 = por %p148, %p149
      %p151 = scmp.ne.s32.totalorder %s139, %s140
      %p152 = scmp.eq.s32.totalorder %s31, 1
      %p153 = por %p151, %p152
      %p155 = scmp.ne.s32.totalorder %s140, %s154
      %p156 = scmp.eq.s32.totalorder %s31, 0
      %p157 = por %p155, %p156
      %s159 = sadd.s32 %s158, 1
      %p162 = scmp.eq.s32.totalorder %s25, 1
      %p163 = scmp.ne.s32.totalorder %s158, %s160
      %p164 = scmp.eq.s32.totalorder %s25, 0
      %p165 = por %p163, %p164
      %p166 = scmp.ne.s32.totalorder %s158, %s160
      %p167 = scmp.eq.s32.totalorder %s30, 1
      %p168 = por %p166, %p167
      %p169 = scmp.ne.s32.totalorder %s160, %s161
      %p170 = scmp.eq.s32.totalorder %s30, 0
      %p171 = por %p169, %p170
      %p172 = scmp.ne.s32.totalorder %s160, %s161
      %p173 = scmp.eq.s32.totalorder %s31, 1
      %p174 = por %p172, %p173
      %p176 = scmp.ne.s32.totalorder %s161, %s175
      %p177 = scmp.eq.s32.totalorder %s31, 0
      %p178 = por %p176, %p177
      %s179 = ssub.s32 %s25, %s32
      %p180 = scmp.eq.s32.totalorder %s179, 0
      %s182 = sadd.s32 %s181, 1
      %s183 = scalar_select %p180, %s181, %s182
      %p186 = pneg %p180
      %p187 = scmp.eq.s32.totalorder %s25, 1
      %p188 = por %p186, %p187
      %p189 = scmp.ne.s32.totalorder %s181, %s184
      %p190 = scmp.eq.s32.totalorder %s25, 0
      %p191 = por %p189, %p190
      %p192 = scmp.ne.s32.totalorder %s181, %s184
      %p193 = scmp.eq.s32.totalorder %s30, 1
      %p194 = por %p192, %p193
      %p195 = scmp.ne.s32.totalorder %s184, %s185
      %p196 = scmp.eq.s32.totalorder %s30, 0
      %p197 = por %p195, %p196
      %p198 = scmp.ne.s32.totalorder %s184, %s185
      %p199 = scmp.eq.s32.totalorder %s31, 1
      %p200 = por %p198, %p199
      %p202 = scmp.ne.s32.totalorder %s185, %s201
      %p203 = scmp.eq.s32.totalorder %s31, 0
      %p204 = por %p202, %p203
      %p205 = scmp.le.s32.totalorder 1, %s25
      %p206 = scmp.lt.s32.totalorder %s25, 3
      %p207 = pnand %p205, %p206
      %p208 = pneg %p207
      // Predicated region
      $region9: #{tpu_custom_call.1} parent=5 // pred_check
        _
      $region10: #{tpu_custom_call.1} parent=5 // pred_check_branch
        %210 = sbr.rel (%p207) target = $region12
      $region11: #{tpu_custom_call.1} parent=5 // pred_region
        %s211 = ssub.s32 %s25, 1
        // Predicated region
        $region13: #{tpu_custom_call.1} parent=11 // pred_check
          %p212 = pneg %p150
        $region14: #{tpu_custom_call.1} parent=11 // pred_check_branch
          %214 = sbr.rel (%p212) target = $region16
        $region15: #{tpu_custom_call.1} parent=11 // pred_region
          _
        $region16: #{tpu_custom_call.1} parent=11 // pred_fallthru
          _
        // Predicated region
        $region17: #{tpu_custom_call.1} parent=11 // pred_check
          %p215 = pneg %p171
        $region18: #{tpu_custom_call.1} parent=11 // pred_check_branch
          %217 = sbr.rel (%p215) target = $region20
        $region19: #{tpu_custom_call.1} parent=11 // pred_region
          _
        $region20: #{tpu_custom_call.1} parent=11 // pred_fallthru
          _
      $region12: #{tpu_custom_call.1} parent=5 // pred_fallthru
        _
      %p218 = scmp.lt.s32.totalorder %s25, 2
      // Predicated region
      $region21: #{tpu_custom_call.1} parent=5 // pred_check
        %p219 = pneg %p218
      $region22: #{tpu_custom_call.1} parent=5 // pred_check_branch
        %221 = sbr.rel (%p219) target = $region24
      $region23: #{tpu_custom_call.1} parent=5 // pred_region
        // Predicated region
        $region25: #{tpu_custom_call.1} parent=23 // pred_check
          %p222 = pneg %p45
        $region26: #{tpu_custom_call.1} parent=23 // pred_check_branch
          %224 = sbr.rel (%p222) target = $region28
        $region27: #{tpu_custom_call.1} parent=23 // pred_region
          %s225 = sand.u32 %s35, 1
          %s226 = scalar_lea.sflag [#allocation4], %s225
          %s227 = sand.u32 %s35, 1
          %s228 = smul.addr %s227, 8
          %s229 = scalar_lea.vmem [#allocation3], %s228
          %s231 = ssub.s32 128, 128
          %232 = vsyncadd %s226, %s231
          %s233 = smul.addr %s25, 128
          %s234 = scalar_lea.hbm %s0, %s233
          %s236 = sshll.u32 %s229, 4
          %s237 = int_to_ptr.vmem [resolvable:$true] %s236
          %239 = dma.hbm_to_vmem [thread:$0]  %s234, 128, %s237, %s226
        $region28: #{tpu_custom_call.1} parent=23 // pred_fallthru
          _
        // Predicated region
        $region29: #{tpu_custom_call.1} parent=23 // pred_check
          %p240 = pneg %p71
        $region30: #{tpu_custom_call.1} parent=23 // pred_check_branch
          %242 = sbr.rel (%p240) target = $region32
        $region31: #{tpu_custom_call.1} parent=23 // pred_region
          %s243 = sand.u32 %s25, 1
          %s244 = scalar_lea.sflag [#allocation7], %s243
          %s245 = sand.u32 %s61, 1
          %s246 = smul.addr %s245, 8
          %s247 = scalar_lea.vmem [#allocation6], %s246
          %s249 = ssub.s32 128, 128
          %250 = vsyncadd %s244, %s249
          %s251 = smul.addr %s25, 128
          %s252 = scalar_lea.hbm %s1, %s251
          %s254 = sshll.u32 %s247, 4
          %s255 = int_to_ptr.vmem [resolvable:$true] %s254
          %257 = dma.hbm_to_vmem [thread:$0]  %s252, 128, %s255, %s244
        $region32: #{tpu_custom_call.1} parent=23 // pred_fallthru
          _
        // Predicated region
        $region33: #{tpu_custom_call.1} parent=23 // pred_check
          %p258 = pneg %p97
        $region34: #{tpu_custom_call.1} parent=23 // pred_check_branch
          %260 = sbr.rel (%p258) target = $region36
        $region35: #{tpu_custom_call.1} parent=23 // pred_region
          %s261 = sand.u32 %s25, 1
          %s262 = scalar_lea.sflag [#allocation7], %s261
          %s263 = sand.u32 %s87, 1
          %s264 = smul.addr %s263, 8
          %s265 = scalar_lea.vmem [#allocation8], %s264
          %s267 = ssub.s32 128, 128
          %268 = vsyncadd %s262, %s267
          %s269 = smul.addr %s25, 128
          %s270 = scalar_lea.hbm %s2, %s269
          %s272 = sshll.u32 %s265, 4
          %s273 = int_to_ptr.vmem [resolvable:$true] %s272
          %275 = dma.hbm_to_vmem [thread:$0]  %s270, 128, %s273, %s262
        $region36: #{tpu_custom_call.1} parent=23 // pred_fallthru
          _
        // Predicated region
        $region37: #{tpu_custom_call.1} parent=23 // pred_check
          %p276 = pneg %p123
        $region38: #{tpu_custom_call.1} parent=23 // pred_check_branch
          %278 = sbr.rel (%p276) target = $region40
        $region39: #{tpu_custom_call.1} parent=23 // pred_region
          %s279 = sand.u32 %s113, 1
          %s280 = scalar_lea.sflag [#allocation10], %s279
          %s281 = sand.u32 %s113, 1
          %s282 = smul.addr %s281, 128
          %s283 = scalar_lea.vmem [#allocation9], %s282
          %s285 = ssub.s32 2048, 2048
          %286 = vsyncadd %s280, %s285
          %s287 = smul.addr %s25, 16
          %s288 = smul.addr %s287, 128
          %s289 = scalar_lea.hbm %s3, %s288
          %s291 = sshll.u32 %s283, 4
          %s292 = int_to_ptr.vmem [resolvable:$true] %s291
          %294 = dma.hbm_to_vmem [thread:$0]  %s289, 2048, %s292, %s280
        $region40: #{tpu_custom_call.1} parent=23 // pred_fallthru
          _
      $region24: #{tpu_custom_call.1} parent=5 // pred_fallthru
        _
      %p295 = scmp.le.s32.totalorder 1, %s25
      %p296 = scmp.lt.s32.totalorder %s25, 3
      %p297 = pnand %p295, %p296
      %p298 = pneg %p297
      // Predicated region
      $region41: #{tpu_custom_call.1} parent=5 // pred_check
        _
      $region42: #{tpu_custom_call.1} parent=5 // pred_check_branch
        %300 = sbr.rel (%p297) target = $region44
      $region43: #{tpu_custom_call.1} parent=5 // pred_region
        %s301 = ssub.s32 %s25, 1
        %s302 = sand.u32 %s38, 1
        %s303 = scalar_lea.sflag [#allocation4], %s302
        %s304 = sand.u32 %s38, 1
        %s305 = smul.addr %s304, 8
        %s306 = scalar_lea.vmem [#allocation3], %s305
        // Predicated region
        $region45: #{tpu_custom_call.1} parent=43 // pred_check
          %p307 = pneg %p51
        $region46: #{tpu_custom_call.1} parent=43 // pred_check_branch
          %309 = sbr.rel (%p307) target = $region48
        $region47: #{tpu_custom_call.1} parent=43 // pred_region
          %310 = dma.done %s303, 128
        $region48: #{tpu_custom_call.1} parent=43 // pred_fallthru
          _
        %s311 = sand.u32 %s30, 1
        %s312 = scalar_lea.sflag [#allocation7], %s311
        %s313 = sand.u32 %s64, 1
        %s314 = smul.addr %s313, 8
        %s315 = scalar_lea.vmem [#allocation6], %s314
        // Predicated region
        $region49: #{tpu_custom_call.1} parent=43 // pred_check
          %p316 = pneg %p77
        $region50: #{tpu_custom_call.1} parent=43 // pred_check_branch
          %318 = sbr.rel (%p316) target = $region52
        $region51: #{tpu_custom_call.1} parent=43 // pred_region
          %319 = dma.done %s312, 128
        $region52: #{tpu_custom_call.1} parent=43 // pred_fallthru
          _
        %s320 = sand.u32 %s30, 1
        %s321 = scalar_lea.sflag [#allocation7], %s320
        %s322 = sand.u32 %s90, 1
        %s323 = smul.addr %s322, 8
        %s324 = scalar_lea.vmem [#allocation8], %s323
        // Predicated region
        $region53: #{tpu_custom_call.1} parent=43 // pred_check
          %p325 = pneg %p103
        $region54: #{tpu_custom_call.1} parent=43 // pred_check_branch
          %327 = sbr.rel (%p325) target = $region56
        $region55: #{tpu_custom_call.1} parent=43 // pred_region
          %328 = dma.done %s321, 128
        $region56: #{tpu_custom_call.1} parent=43 // pred_fallthru
          _
        %s329 = sand.u32 %s116, 1
        %s330 = scalar_lea.sflag [#allocation10], %s329
        %s331 = sand.u32 %s116, 1
        %s332 = smul.addr %s331, 128
        %s333 = scalar_lea.vmem [#allocation9], %s332
        // Predicated region
        $region57: #{tpu_custom_call.1} parent=43 // pred_check
          %p334 = pneg %p129
        $region58: #{tpu_custom_call.1} parent=43 // pred_check_branch
          %336 = sbr.rel (%p334) target = $region60
        $region59: #{tpu_custom_call.1} parent=43 // pred_region
          %337 = dma.done %s330, 2048
        $region60: #{tpu_custom_call.1} parent=43 // pred_fallthru
          _
        %s338 = sand.u32 %s38, 1
        %s339 = scalar_lea.sflag [#allocation4], %s338
        %s340 = sand.u32 %s38, 1
        %s341 = smul.addr %s340, 8
        %s342 = scalar_lea.vmem [#allocation3], %s341
        %p343 = pneg %p51
        %p344 = pneg %p48
        %s345 = sand.u32 %s30, 1
        %s346 = scalar_lea.sflag [#allocation7], %s345
        %s347 = sand.u32 %s64, 1
        %s348 = smul.addr %s347, 8
        %s349 = scalar_lea.vmem [#allocation6], %s348
        %p350 = pneg %p77
        %p351 = pneg %p74
        %s352 = sand.u32 %s30, 1
        %s353 = scalar_lea.sflag [#allocation7], %s352
        %s354 = sand.u32 %s90, 1
        %s355 = smul.addr %s354, 8
        %s356 = scalar_lea.vmem [#allocation8], %s355
        %p357 = pneg %p103
        %p358 = pneg %p100
        %s359 = sand.u32 %s116, 1
        %s360 = scalar_lea.sflag [#allocation10], %s359
        %s361 = sand.u32 %s116, 1
        %s362 = smul.addr %s361, 128
        %s363 = scalar_lea.vmem [#allocation9], %s362
        %p364 = pneg %p129
        %p365 = pneg %p126
        %p366 = pneg %p150
        %p367 = pneg %p147
        %p368 = pneg %p171
        %p369 = pneg %p168
        %p370 = pneg %p197
        %p371 = pneg %p194
        %s372 = sand.u32 %s184, 1
        %s373 = scalar_lea.sflag [#allocation5], %s372
        %s374 = sand.u32 %s184, 1
        %s375 = smul.addr %s374, 16
        %s376 = scalar_lea.vmem [#allocation11], %s375
        %v377 = vld [vmem:[%s306] sm:$0xff]
        %v378 = vld [vmem:[%s4] sm:$0x1]
        %v380 = vlaneseq
        %v381 = vshrl.u32 %v380, 7
        %v382 = vsub.s32 0, %v381
        %v383 = vrot.slane %v378, %v382
        %v385 = vmul.f32 %v377, %v383
        %386 = vadd.xlane.f32.xlu0 %v385
        %v387 = vpop.xlane.xlu0 %386
        %s388 = sld [smem:[#allocation2]]
        %v389 = vstv %s388
        %v390 = vadd.f32 %v387, %v389
        %v391 = vxor.u32 %v390, 2147483648
        %v392 = vmul.f32 %v391, 1.442695
        %v393 = vpow.pop %v392
        %v394 = vadd.f32 %v393, 1.0
        %v395 = vrcp.pop %v394
        %v396 = vmul.f32 1.0, %v395
        %v397 = vld [vmem:[%s324] sm:$0xff]
        %398 = vmax.xlane.f32.xlu0 %v397
        %v399 = vpop.xlane.xlu0 %398
        %v400 = vsub.f32 %v397, %v399
        %v401 = vmul.f32 %v400, 1.442695
        %v402 = vpow.pop %v401
        %403 = vadd.xlane.f32.xlu0 %v402
        %v404 = vpop.xlane.xlu0 %403
        %v405 = vrcp.pop %v404
        %v406 = vmul.f32 %v402, %v405
        %v407 = vmul.f32 %v406, %v396
        %v408 = vld [vmem:[%s315] sm:$0xff]
        %vm409 = vcmask 130048
        %v410 = vsel %vm409, %v408, -inf
        %411 = vmax.xlane.f32.xlu0 %v410
        %v412 = vpop.xlane.xlu0 %411
        %v413 = vsub.f32 %v408, %v412
        %v414 = vmul.f32 %v413, 1.442695
        %v415 = vpow.pop %v414
        %v416 = vsel %vm409, %v415, 0.0
        %417 = vadd.xlane.f32.xlu0 %v416
        %v418 = vpop.xlane.xlu0 %417
        %v419 = vrcp.pop %v418
        %v420 = vmul.f32 %v415, %v419
        %v421 = vld [vmem:[%s333] sm:$0xff]
        %423 = vset.pattern.permute.xlu0 0
        %424 = vperm.xlu0 %423, %v420
        %v425 = vpop.permute.xlu0 %424
        %v427 = vmul.f32 %v425, %v421
        %v428 = vld [vmem:[%s333 + $0x8] sm:$0xff]
        %429 = vset.pattern.permute.xlu0 1
        %430 = vperm.xlu0 %429, %v420
        %v431 = vpop.permute.xlu0 %430
        %v433 = vmul.f32 %v431, %v428
        %v434 = vadd.f32 %v427, %v433
        %v435 = vld [vmem:[%s333 + $0x10] sm:$0xff]
        %436 = vset.pattern.permute.xlu0 2
        %437 = vperm.xlu0 %436, %v420
        %v438 = vpop.permute.xlu0 %437
        %v440 = vmul.f32 %v438, %v435
        %v441 = vadd.f32 %v434, %v440
        %v442 = vld [vmem:[%s333 + $0x18] sm:$0xff]
        %443 = vset.pattern.permute.xlu0 3
        %444 = vperm.xlu0 %443, %v420
        %v445 = vpop.permute.xlu0 %444
        %v447 = vmul.f32 %v445, %v442
        %v448 = vadd.f32 %v441, %v447
        %v449 = vld [vmem:[%s333 + $0x20] sm:$0xff]
        %450 = vset.pattern.permute.xlu0 4
        %451 = vperm.xlu0 %450, %v420
        %v452 = vpop.permute.xlu0 %451
        %v454 = vmul.f32 %v452, %v449
        %v455 = vadd.f32 %v448, %v454
        %v456 = vld [vmem:[%s333 + $0x28] sm:$0xff]
        %457 = vset.pattern.permute.xlu0 5
        %458 = vperm.xlu0 %457, %v420
        %v459 = vpop.permute.xlu0 %458
        %v461 = vmul.f32 %v459, %v456
        %v462 = vadd.f32 %v455, %v461
        %v463 = vld [vmem:[%s333 + $0x30] sm:$0xff]
        %464 = vset.pattern.permute.xlu0 6
        %465 = vperm.xlu0 %464, %v420
        %v466 = vpop.permute.xlu0 %465
        %v468 = vmul.f32 %v466, %v463
        %v469 = vadd.f32 %v462, %v468
        %v470 = vld [vmem:[%s333 + $0x38] sm:$0xff]
        %471 = vset.pattern.permute.xlu0 7
        %472 = vperm.xlu0 %471, %v420
        %v473 = vpop.permute.xlu0 %472
        %v475 = vmul.f32 %v473, %v470
        %v476 = vadd.f32 %v469, %v475
        %v477 = vld [vmem:[%s333 + $0x40] sm:$0xff]
        %478 = vset.pattern.permute.xlu0 8
        %479 = vperm.xlu0 %478, %v420
        %v480 = vpop.permute.xlu0 %479
        %v482 = vmul.f32 %v480, %v477
        %v483 = vadd.f32 %v476, %v482
        %v484 = vld [vmem:[%s333 + $0x48] sm:$0xff]
        %485 = vset.pattern.permute.xlu0 9
        %486 = vperm.xlu0 %485, %v420
        %v487 = vpop.permute.xlu0 %486
        %v489 = vmul.f32 %v487, %v484
        %v490 = vadd.f32 %v483, %v489
        %v491 = vld [vmem:[%s333 + $0x50] sm:$0xff]
        %492 = vset.pattern.permute.xlu0 10
        %493 = vperm.xlu0 %492, %v420
        %v494 = vpop.permute.xlu0 %493
        %v496 = vmul.f32 %v494, %v491
        %v497 = vadd.f32 %v490, %v496
        %v498 = vld [vmem:[%s333 + $0x58] sm:$0xff]
        %499 = vset.pattern.permute.xlu0 11
        %500 = vperm.xlu0 %499, %v420
        %v501 = vpop.permute.xlu0 %500
        %v503 = vmul.f32 %v501, %v498
        %v504 = vadd.f32 %v497, %v503
        %v505 = vld [vmem:[%s333 + $0x60] sm:$0xff]
        %506 = vset.pattern.permute.xlu0 12
        %507 = vperm.xlu0 %506, %v420
        %v508 = vpop.permute.xlu0 %507
        %v510 = vmul.f32 %v508, %v505
        %v511 = vadd.f32 %v504, %v510
        %v512 = vld [vmem:[%s333 + $0x68] sm:$0xff]
        %513 = vset.pattern.permute.xlu0 13
        %514 = vperm.xlu0 %513, %v420
        %v515 = vpop.permute.xlu0 %514
        %v517 = vmul.f32 %v515, %v512
        %v518 = vadd.f32 %v511, %v517
        %v519 = vld [vmem:[%s333 + $0x70] sm:$0xff]
        %520 = vset.pattern.permute.xlu0 14
        %521 = vperm.xlu0 %520, %v420
        %v522 = vpop.permute.xlu0 %521
        %v524 = vmul.f32 %v522, %v519
        %v525 = vadd.f32 %v518, %v524
        %v526 = vld [vmem:[%s333 + $0x78] sm:$0xff]
        %527 = vset.pattern.permute.xlu0 15
        %528 = vperm.xlu0 %527, %v420
        %v529 = vpop.permute.xlu0 %528
        %v531 = vmul.f32 %v529, %v526
        %v532 = vadd.f32 %v525, %v531
        %v533 = vsub.f32 1.0, %v396
        %v534 = vmul.f32 %v532, %v533
        %535 = vst [vmem:[%s376] sm:$0xff] %v407
        %536 = vst [vmem:[%s376 + $0x8] sm:$0xff] %v534
        %s537 = sand.u32 %s184, 1
        %s538 = scalar_lea.sflag [#allocation5], %s537
        %s539 = sand.u32 %s184, 1
        %s540 = smul.addr %s539, 16
        %s541 = scalar_lea.vmem [#allocation11], %s540
        // Predicated region
        $region61: #{tpu_custom_call.1} parent=43 // pred_check
          %p542 = pneg %p194
        $region62: #{tpu_custom_call.1} parent=43 // pred_check_branch
          %544 = sbr.rel (%p542) target = $region64
        $region63: #{tpu_custom_call.1} parent=43 // pred_region
          %s546 = ssub.s32 256, 256
          %547 = vsyncadd %s538, %s546
          %s548 = smul.addr %s30, 2
          %s549 = smul.addr %s548, 128
          %s550 = scalar_lea.hbm %s6, %s549
          %s552 = sshll.u32 %s541, 4
          %s553 = int_to_ptr.vmem [resolvable:$true] %s552
          %555 = dma.vmem_to_hbm [thread:$0]  %s553, 256, %s550, %s538
        $region64: #{tpu_custom_call.1} parent=43 // pred_fallthru
          _
      $region44: #{tpu_custom_call.1} parent=5 // pred_fallthru
        _
      %p556 = scmp.le.s32.totalorder 2, %s25
      // Predicated region
      $region65: #{tpu_custom_call.1} parent=5 // pred_check
        %p557 = pneg %p556
      $region66: #{tpu_custom_call.1} parent=5 // pred_check_branch
        %559 = sbr.rel (%p557) target = $region68
      $region67: #{tpu_custom_call.1} parent=5 // pred_region
        %s560 = ssub.s32 %s25, 2
        // Predicated region
        $region69: #{tpu_custom_call.1} parent=67 // pred_check
          %p561 = pneg %p200
        $region70: #{tpu_custom_call.1} parent=67 // pred_check_branch
          %563 = sbr.rel (%p561) target = $region72
        $region71: #{tpu_custom_call.1} parent=67 // pred_region
          %s564 = sand.u32 %s185, 1
          %s565 = scalar_lea.sflag [#allocation5], %s564
          %s566 = sand.u32 %s185, 1
          %s567 = smul.addr %s566, 16
          %s568 = scalar_lea.vmem [#allocation11], %s567
          %569 = dma.done %s565, 256
        $region72: #{tpu_custom_call.1} parent=67 // pred_fallthru
          _
      $region68: #{tpu_custom_call.1} parent=5 // pred_fallthru
        _
    $region6: #{tpu_custom_call.1} parent=1 // loop_footer
      %s29 = sadd.s32 1, %s25
    $region7: #{tpu_custom_call.1} parent=1 // loop_footer_branch
      %24 = sbr.rel target = $region3
    $region8: #{tpu_custom_call.1} parent=1 // loop_exit
      _
    %570 = vsyncpa [#allocation4], 1
    %s571 = scalar_lea.sflag [#allocation4], 1
    %572 = vsyncpa %s571, 1
    %573 = vsyncpa [#allocation7], 1
    %s574 = scalar_lea.sflag [#allocation7], 1
    %575 = vsyncpa %s574, 1
    %576 = vsyncpa [#allocation10], 1
    %s577 = scalar_lea.sflag [#allocation10], 1
    %578 = vsyncpa %s577, 1
    %579 = vsyncpa [#allocation5], 1
    %s580 = scalar_lea.sflag [#allocation5], 1
    %581 = vsyncpa %s580, 1

</llo_original>
